<compile_context>
chip_gen: v7x
topology: tpu7x:2x2x1
jax: 0.10.0
libtpu: 0.0.40
codegen_flags: <defaults>
</compile_context>

<pallas_src>
import jax
import jax.numpy as jnp
from jax.experimental import pallas as pl
from jax.experimental.pallas import tpu as pltpu

EPS = 1e-5        # PyTorch BatchNorm1d default eps
OUT_PAD = 128     # lane-dense padded width for the final output store
BATCH_TILE = 128  # batch tile for the gridded (large-batch) path


def make_mlp_kernel(num_linear):
    """Fused kernel for `num_linear` (BN-folded) linear layers.

    Ref order: x, (w0, b0), (w1, b1), ..., out.
    Weights are (in, out) bf16; biases are (1, out) f32.
    ReLU is applied after every linear except the last (output) one.
    Dropout is identity in eval mode.
    """
    def kernel(*refs):
        out_ref = refs[-1]
        h = refs[0][...]                                    # bf16 (TB, F_in)
        for i in range(num_linear):
            w = refs[1 + 2 * i][...]                        # bf16 (in, out)
            b = refs[2 + 2 * i][...]                        # f32  (1, out)
            z = jnp.dot(h, w, preferred_element_type=jnp.float32) + b   # MXU, f32 acc
            if i < num_linear - 1:
                z = jnp.maximum(z, 0.0)                     # ReLU (VPU)
                # TODO(synk): training-mode dropout (pltpu.prng_random_bits mask)
                # and batch-statistics BN are not implemented (eval mode only).
                h = z.astype(jnp.bfloat16)                  # bf16 for next MXU pass
            else:
                out_ref[...] = z.astype(out_ref.dtype)      # lane-dense (TB, OUT_PAD)
    return kernel


def fold_bn_into_linears(params, out_pad=OUT_PAD):
    """Host-side, one-time parameter folding.

    BN_i(z) = z * s_i + t_i with s_i = gamma_i * rsqrt(rvar_i + eps),
    t_i = beta_i - rmean_i * s_i.  Since BN_i output feeds directly into the next
    Linear, fold (s_i, t_i) into that Linear's weight/bias.  Weights are returned
    pre-transposed to (in, out) and cast to bf16; biases stay f32.  The output
    layer is zero-padded to `out_pad` columns for a lane-dense store.
    """
    layers, (w_out, b_out) = params
    folded = []
    s_prev, t_prev = None, None
    for (w, b, gamma, beta, rmean, rvar) in layers:
        if s_prev is None:
            wf, bf = w, b
        else:
            wf = w * s_prev                 # (h, in) * (1, in)
            bf = b + t_prev @ w.T           # (1, h)
        folded.append((wf.T.astype(jnp.bfloat16), bf.astype(jnp.float32)))
        s = gamma * jax.lax.rsqrt(rvar + EPS)
        t = beta - rmean * s
        s_prev, t_prev = s, t

    # Output linear, with the last BN folded in.
    wf = w_out * s_prev                     # (O, h_L)
    bf = b_out + t_prev @ w_out.T           # (1, O)
    w_out_t = wf.T                          # (h_L, O)
    o = w_out_t.shape[1]
    w_out_t = jnp.pad(w_out_t, ((0, 0), (0, out_pad - o)))
    bf = jnp.pad(bf, ((0, 0), (0, out_pad - o)))
    folded.append((w_out_t.astype(jnp.bfloat16), bf.astype(jnp.float32)))
    return folded, o


def mlp_forward(x, folded_params, output_size, out_pad=OUT_PAD, batch_tile=BATCH_TILE):
    """Run the fused Pallas kernel; slice the lane-padded output back to `output_size`."""
    B, f_in = x.shape
    num_linear = len(folded_params)
    flat_inputs = [x.astype(jnp.bfloat16)]
    for w, b in folded_params:
        flat_inputs += [w, b]

    kernel = make_mlp_kernel(num_linear)

    if B <= batch_tile:
        # Single-block path: everything (a few KiB) fits in one VMEM block.
        vmem = pl.BlockSpec(memory_space=pltpu.MemorySpace.VMEM)
        out_padded = pl.pallas_call(
            kernel,
            out_shape=jax.ShapeDtypeStruct((B, out_pad), jnp.float32),
            in_specs=[vmem] * len(flat_inputs),
            out_specs=vmem,
        )(*flat_inputs)
        return out_padded[:, :output_size]

    # Gridded path: tile batch, parameters broadcast to every tile.
    b_pad = pl.cdiv(B, batch_tile) * batch_tile
    if b_pad != B:
        flat_inputs[0] = jnp.pad(flat_inputs[0], ((0, b_pad - B), (0, 0)))

    in_specs = [pl.BlockSpec((batch_tile, f_in), lambda i: (i, 0))]
    for w, b in folded_params:
        in_specs.append(pl.BlockSpec(w.shape, lambda i: (0, 0)))
        in_specs.append(pl.BlockSpec(b.shape, lambda i: (0, 0)))

    out_padded = pl.pallas_call(
        kernel,
        out_shape=jax.ShapeDtypeStruct((b_pad, out_pad), jnp.float32),
        grid=(b_pad // batch_tile,),
        in_specs=in_specs,
        out_specs=pl.BlockSpec((batch_tile, out_pad), lambda i: (i, 0)),
        compiler_params=pltpu.CompilerParams(dimension_semantics=("parallel",)),
    )(*flat_inputs)
    return out_padded[:B, :output_size]


def init_params(key, input_size, initial_hidden_size, output_size, num_layers=1):
    """Deterministic parameters mirroring the PyTorch module (eval mode)."""
    layers = []
    cur = input_size
    hidden = initial_hidden_size
    keys = jax.random.split(key, num_layers + 1)
    for i in range(num_layers):
        k = jax.random.split(keys[i], 6)
        w = jax.random.normal(k[0], (hidden, cur), jnp.float32) * 0.1
        b = jax.random.normal(k[1], (1, hidden), jnp.float32) * 0.1
        gamma = 1.0 + 0.1 * jax.random.normal(k[2], (1, hidden), jnp.float32)
        beta = 0.1 * jax.random.normal(k[3], (1, hidden), jnp.float32)
        rmean = 0.1 * jax.random.normal(k[4], (1, hidden), jnp.float32)
        rvar = 1.0 + 0.1 * jax.random.uniform(k[5], (1, hidden), jnp.float32)
        layers.append((w, b, gamma, beta, rmean, rvar))
        cur = hidden
        hidden //= 2
    ko = jax.random.split(keys[-1], 2)
    w_out = jax.random.normal(ko[0], (output_size, cur), jnp.float32) * 0.1
    b_out = jax.random.normal(ko[1], (1, output_size), jnp.float32) * 0.1
    return layers, (w_out, b_out)


def reference_forward(x, params):
    """Pure-JAX f32 reference of the PyTorch forward pass (eval mode)."""
    layers, (w_out, b_out) = params
    h = x
    for (w, b, gamma, beta, rmean, rvar) in layers:
        h = h @ w.T + b
        h = jnp.maximum(h, 0.0)
        # Dropout: identity in eval mode.
        h = (h - rmean) * jax.lax.rsqrt(rvar + EPS) * gamma + beta
    return h @ w_out.T + b_out


if __name__ == "__main__":
    # Shapes consistent with the module defaults: batch=8, input_size=32,
    # initial_hidden_size=32, output_size=1.
    B, INPUT_SIZE, HIDDEN_SIZE, OUTPUT_SIZE = 8, 32, 32, 1
    key = jax.random.PRNGKey(0)
    kx, kp, kx2 = jax.random.split(key, 3)
    x = jax.random.normal(kx, (B, INPUT_SIZE), jnp.float32)

    # num_layers = 1 (module default), single-block path.
    params1 = init_params(kp, INPUT_SIZE, HIDDEN_SIZE, OUTPUT_SIZE, num_layers=1)
    folded1, o1 = fold_bn_into_linears(params1)
    out1 = jax.block_until_ready(mlp_forward(x, folded1, o1))
    ref1 = reference_forward(x, params1)
    assert out1.shape == (B, OUTPUT_SIZE), out1.shape
    # Tolerance covers bf16 matmul operands (f32 accumulation) vs. the f32 reference.
    assert jnp.allclose(out1, ref1, atol=5e-2, rtol=5e-2), "mismatch vs reference (L=1)"

    # num_layers = 2 (hidden sizes 32 -> 16), exercising the multi-layer path.
    params2 = init_params(kp, INPUT_SIZE, HIDDEN_SIZE, OUTPUT_SIZE, num_layers=2)
    folded2, o2 = fold_bn_into_linears(params2)
    out2 = jax.block_until_ready(mlp_forward(x, folded2, o2))
    ref2 = reference_forward(x, params2)
    assert out2.shape == (B, OUTPUT_SIZE), out2.shape
    assert jnp.allclose(out2, ref2, atol=5e-2, rtol=5e-2), "mismatch vs reference (L=2)"

    # Larger batch exercising the gridded ("parallel" over batch tiles) path.
    B_LARGE = 256
    x_large = jax.random.normal(kx2, (B_LARGE, INPUT_SIZE), jnp.float32)
    out3 = jax.block_until_ready(mlp_forward(x_large, folded2, o2))
    ref3 = reference_forward(x_large, params2)
    assert out3.shape == (B_LARGE, OUTPUT_SIZE), out3.shape
    assert jnp.allclose(out3, ref3, atol=5e-2, rtol=5e-2), "mismatch vs reference (grid)"

    print("KERNEL_OK")
</pallas_src>

<mosaic_0001>
module attributes {stable_mosaic.version = 11 : i64} {
  func.func @kernel(%arg0: memref<8x32xbf16, #tpu.memory_space<vmem>>, %arg1: memref<32x32xbf16, #tpu.memory_space<vmem>>, %arg2: memref<1x32xf32, #tpu.memory_space<vmem>>, %arg3: memref<32x128xbf16, #tpu.memory_space<vmem>>, %arg4: memref<1x128xf32, #tpu.memory_space<vmem>>, %arg5: memref<8x128xf32, #tpu.memory_space<vmem>>) attributes {dimension_semantics = [], scalar_prefetch = 0 : i64, scratch_operands = 0 : i64, tpu.core_type = #tpu.core_type<tc>} {
    %c0 = arith.constant 0 : index
    %c0_0 = arith.constant 0 : index
    %0 = vector.load %arg0[%c0, %c0_0] : memref<8x32xbf16, #tpu.memory_space<vmem>>, vector<8x32xbf16>
    %c0_1 = arith.constant 0 : index
    %c0_2 = arith.constant 0 : index
    %1 = vector.load %arg1[%c0_1, %c0_2] : memref<32x32xbf16, #tpu.memory_space<vmem>>, vector<32x32xbf16>
    %c0_3 = arith.constant 0 : index
    %c0_4 = arith.constant 0 : index
    %2 = vector.load %arg2[%c0_3, %c0_4] : memref<1x32xf32, #tpu.memory_space<vmem>>, vector<1x32xf32>
    %cst = arith.constant dense<0.000000e+00> : vector<8x32xf32>
    %3 = tpu.matmul %0, %1, %cst {dimension_numbers = #tpu.dot_dimension_numbers<[1], [0], [0], [1], [0, 0, 1, 1], [], []>} : vector<8x32xbf16>, vector<32x32xbf16>, vector<8x32xf32> -> vector<8x32xf32>
    %4 = vector.broadcast %2 : vector<1x32xf32> to vector<8x32xf32>
    %5 = arith.addf %3, %4 : vector<8x32xf32>
    %cst_5 = arith.constant 0.000000e+00 : f32
    %6 = vector.broadcast %cst_5 : f32 to vector<8x32xf32>
    %7 = arith.maximumf %5, %6 : vector<8x32xf32>
    %8 = arith.truncf %7 : vector<8x32xf32> to vector<8x32xbf16>
    %c0_6 = arith.constant 0 : index
    %c0_7 = arith.constant 0 : index
    %9 = vector.load %arg3[%c0_6, %c0_7] : memref<32x128xbf16, #tpu.memory_space<vmem>>, vector<32x128xbf16>
    %c0_8 = arith.constant 0 : index
    %c0_9 = arith.constant 0 : index
    %10 = vector.load %arg4[%c0_8, %c0_9] : memref<1x128xf32, #tpu.memory_space<vmem>>, vector<1x128xf32>
    %cst_10 = arith.constant dense<0.000000e+00> : vector<8x128xf32>
    %11 = tpu.matmul %8, %9, %cst_10 {dimension_numbers = #tpu.dot_dimension_numbers<[1], [0], [0], [1], [0, 0, 1, 1], [], []>} : vector<8x32xbf16>, vector<32x128xbf16>, vector<8x128xf32> -> vector<8x128xf32>
    %12 = vector.broadcast %10 : vector<1x128xf32> to vector<8x128xf32>
    %13 = arith.addf %11, %12 : vector<8x128xf32>
    %c0_11 = arith.constant 0 : index
    %c0_12 = arith.constant 0 : index
    %14 = vector.load %arg5[%c0_11, %c0_12] : memref<8x128xf32, #tpu.memory_space<vmem>>, vector<8x128xf32>
    tpu.vector_store %arg5[%c0_11, %c0_12], %13 {strides = array<i32>} : memref<8x128xf32, #tpu.memory_space<vmem>>, vector<8x128xf32>,
    return
  }
}

</mosaic_0001>

<llo_original>
// kernel: tpu_custom_call.1
$region0: #{tpu_custom_call.1}
  #allocation0 [shape = 'u32[]', space=smem, size = 0x4, offset = 0x4, fixed_abs, tag = 'smem constant byte address 0x4 - core index']
  #allocation1 [shape = 'u32[144,128]{1,0:T(1,128)}', space=vmem, size = 0x12000, scoped, tag = 'internal scratch']
  %s0 = inlined_call_operand.hbm [shape: bf16[8,32], index: 0, kind: input, shape index: {}]
  %s1 = inlined_call_operand.hbm [shape: bf16[32,32], index: 1, kind: input, shape index: {}]
  %s2 = inlined_call_operand.vmem [shape: f32[1,32], index: 2, kind: input, shape index: {}]
  %s3 = inlined_call_operand.hbm [shape: bf16[32,128], index: 3, kind: input, shape index: {}]
  %s4 = inlined_call_operand.vmem [shape: f32[1,128], index: 4, kind: input, shape index: {}]
  %s5 = inlined_call_operand.hbm [shape: f32[8,128], index: 5, kind: output, shape index: {}]
  %s6 = sld [smem:[#allocation0]]
  $region42: #{tpu_custom_call.1} parent=0
    _
  %s8 = ssub.s32 1, %s6
  %s9 = scalar_select 0, %s8, %s6
  $region1: #{tpu_custom_call.1} parent=0
    #allocation2 [shape = 'u8[2048]{0}', space=vmem, size = 0x800, scoped, tag = 'input window, operand 0, single buffered']
    #allocation3 [shape = 's32[1]{0}', space=sflag, size = 0x4, scoped, tag = 'scoped memory for tpu_custom_call.1']
    #allocation4 [shape = 's32[1]{0}', space=sflag, size = 0x4, scoped, tag = 'scoped memory for tpu_custom_call.1']
    #allocation5 [shape = 'u8[8192]{0}', space=vmem, size = 0x2000, scoped, tag = 'input window, operand 1, single buffered']
    #allocation6 [shape = 's32[1]{0}', space=sflag, size = 0x4, scoped, tag = 'scoped memory for tpu_custom_call.1']
    #allocation7 [shape = 'u8[8192]{0}', space=vmem, size = 0x2000, scoped, tag = 'input window, operand 3, single buffered']
    #allocation8 [shape = 'u8[4096]{0}', space=vmem, size = 0x1000, scoped, tag = 'output window, operand 0, single buffered']
    %10 = vsyncpa [#allocation3], 0
    %11 = vsyncpa [#allocation6], 0
    %12 = vsyncpa [#allocation4], 0
    // Predicated region
    $region2: #{tpu_custom_call.1} parent=1 // pred_check
      _
    $region3: #{tpu_custom_call.1} parent=1 // pred_check_branch
      %14 = sbr.rel (0) target = $region5
    $region4: #{tpu_custom_call.1} parent=1 // pred_region
      %s16 = ssub.s32 64, 64
      %17 = vsyncadd [#allocation3], %s16
      %s19 = sshll.u32 [#allocation2], 4
      %s20 = int_to_ptr.vmem [resolvable:$true] %s19
      %22 = dma.hbm_to_vmem [thread:$0]  %s0, 64, %s20, [#allocation3]
    $region5: #{tpu_custom_call.1} parent=1 // pred_fallthru
      _
    // Predicated region
    $region6: #{tpu_custom_call.1} parent=1 // pred_check
      _
    $region7: #{tpu_custom_call.1} parent=1 // pred_check_branch
      %24 = sbr.rel (0) target = $region9
    $region8: #{tpu_custom_call.1} parent=1 // pred_region
      %s26 = ssub.s32 256, 256
      %27 = vsyncadd [#allocation6], %s26
      %s28 = sshll.u32 [#allocation5], 4
      %s29 = int_to_ptr.vmem [resolvable:$true] %s28
      %34 = dma.hbm_to_vmem [thread:$0]  %s1, 256, %s29, [#allocation6], 64, 64, 4
    $region9: #{tpu_custom_call.1} parent=1 // pred_fallthru
      _
    // Predicated region
    $region10: #{tpu_custom_call.1} parent=1 // pred_check
      _
    $region11: #{tpu_custom_call.1} parent=1 // pred_check_branch
      %36 = sbr.rel (0) target = $region13
    $region12: #{tpu_custom_call.1} parent=1 // pred_region
      _
    $region13: #{tpu_custom_call.1} parent=1 // pred_fallthru
      _
    // Predicated region
    $region14: #{tpu_custom_call.1} parent=1 // pred_check
      _
    $region15: #{tpu_custom_call.1} parent=1 // pred_check_branch
      %38 = sbr.rel (0) target = $region17
    $region16: #{tpu_custom_call.1} parent=1 // pred_region
      %s40 = ssub.s32 256, 256
      %41 = vsyncadd [#allocation6], %s40
      %s42 = sshll.u32 [#allocation7], 4
      %s43 = int_to_ptr.vmem [resolvable:$true] %s42
      %48 = dma.hbm_to_vmem [thread:$0]  %s3, 256, %s43, [#allocation6], 64, 64, 4
    $region17: #{tpu_custom_call.1} parent=1 // pred_fallthru
      _
    // Predicated region
    $region18: #{tpu_custom_call.1} parent=1 // pred_check
      _
    $region19: #{tpu_custom_call.1} parent=1 // pred_check_branch
      %50 = sbr.rel (0) target = $region21
    $region20: #{tpu_custom_call.1} parent=1 // pred_region
      _
    $region21: #{tpu_custom_call.1} parent=1 // pred_fallthru
      _
    // Predicated region
    $region22: #{tpu_custom_call.1} parent=1 // pred_check
      _
    $region23: #{tpu_custom_call.1} parent=1 // pred_check_branch
      %52 = sbr.rel (0) target = $region25
    $region24: #{tpu_custom_call.1} parent=1 // pred_region
      %53 = dma.done [#allocation3], 64
    $region25: #{tpu_custom_call.1} parent=1 // pred_fallthru
      _
    // Predicated region
    $region26: #{tpu_custom_call.1} parent=1 // pred_check
      _
    $region27: #{tpu_custom_call.1} parent=1 // pred_check_branch
      %55 = sbr.rel (0) target = $region29
    $region28: #{tpu_custom_call.1} parent=1 // pred_region
      %56 = dma.done [#allocation6], 256
    $region29: #{tpu_custom_call.1} parent=1 // pred_fallthru
      _
    // Predicated region
    $region30: #{tpu_custom_call.1} parent=1 // pred_check
      _
    $region31: #{tpu_custom_call.1} parent=1 // pred_check_branch
      %58 = sbr.rel (0) target = $region33
    $region32: #{tpu_custom_call.1} parent=1 // pred_region
      %59 = dma.done [#allocation6], 256
    $region33: #{tpu_custom_call.1} parent=1 // pred_fallthru
      _
    %v61 = vld [vmem:[#allocation2] sm:$0xf]
    %v62 = vld [vmem:[#allocation5] sm:$0xf]
    %v63 = vld [vmem:[#allocation5 + $0x4] sm:$0xf]
    %v64 = vld [vmem:[#allocation5 + $0x8] sm:$0xf]
    %v65 = vld [vmem:[#allocation5 + $0xc] sm:$0xf]
    %v66 = vld [vmem:[%s2] sm:$0x1]
    %v68 = vlaneseq
    %v69 = vshrl.u32 %v68, 7
    %v70 = vsub.s32 0, %v69
    %v71 = vrot.slane %v66, %v70
    %v77 = vunpack.c.l.b16 %v62
    %v78 = vunpack.c.l.b16 %v63
    %v79 = vunpack.c.l.b16 %v64
    %v80 = vunpack.c.l.b16 %v65
    %v81 = vpack.c.b16 %v78, %v77
    %v82 = vpack.c.b16 %v80, %v79
    %vm85 = vcmask 261120
    %v87 = vsel %vm85, %v61, 0
    %89 = vmatprep.subr.bf16.mxu0 0
    %90 = vmatpush1.bf16.msra.mxu0 %v81
    %91 = vmatprep.subr.bf16.mxu0 0
    %92 = vmatpush1.bf16.msra.mxu0 %v82
    %93 = vmatprep.subr.bf16.mxu0 0
    %94 = vmatpush1.bf16.msra.mxu0 0
    %95 = vmatprep.subr.bf16.mxu0 0
    %96 = vmatpush1.bf16.msra.mxu0 0
    %97 = vmatprep.subr.bf16.mxu0 0
    %98 = vmatpush1.bf16.msra.mxu0 0
    %99 = vmatprep.subr.bf16.mxu0 0
    %100 = vmatpush1.bf16.msra.mxu0 0
    %101 = vmatprep.subr.bf16.mxu0 0
    %102 = vmatpush1.bf16.msra.mxu0 0
    %103 = vmatprep.subr.bf16.mxu0 0
    %104 = vmatpush1.bf16.msra.mxu0 0
    %105 = vmatprep.subr.bf16.mxu0 0
    %106 = vmatpush1.bf16.msra.mxu0 0
    %107 = vmatprep.subr.bf16.mxu0 0
    %108 = vmatpush1.bf16.msra.mxu0 0
    %109 = vmatprep.subr.bf16.mxu0 0
    %110 = vmatpush1.bf16.msra.mxu0 0
    %111 = vmatprep.subr.bf16.mxu0 0
    %112 = vmatpush1.bf16.msra.mxu0 0
    %113 = vmatprep.subr.bf16.mxu0 0
    %114 = vmatpush1.bf16.msra.mxu0 0
    %115 = vmatprep.subr.bf16.mxu0 0
    %116 = vmatpush1.bf16.msra.mxu0 0
    %117 = vmatprep.subr.bf16.mxu0 0
    %118 = vmatpush1.bf16.msra.mxu0 0
    %119 = vmatprep.subr.bf16.mxu0 0
    %120 = vmatpush1.bf16.msra.mxu0 0
    %121 = vmatprep.mubr.bf16.mxu0 0
    %122 = vmatmul.mubr.bf16.gmra.mrb[0].mxu0 %v87
    %v123 = vpop.f32.mrb[0].mxu0
    %v124 = vadd.f32 %v71, %v123
    %v125 = vpop.f32.mrb[0].mxu0
    %v126 = vpop.f32.mrb[0].mxu0
    %v127 = vpop.f32.mrb[0].mxu0
    %128 = vdwg.mxu0
    %v129 = vmax.f32 %v124, 0.0
    %v130 = vpack.c.bf16 %v129, %v129
    %v131 = vld [vmem:[#allocation7] sm:$0xf]
    %v132 = vld [vmem:[#allocation7 + $0x4] sm:$0xf]
    %v133 = vld [vmem:[#allocation7 + $0x8] sm:$0xf]
    %v134 = vld [vmem:[#allocation7 + $0xc] sm:$0xf]
    %v135 = vld [vmem:[%s4] sm:$0x1]
    %v137 = vlaneseq
    %v138 = vshrl.u32 %v137, 7
    %v139 = vsub.s32 0, %v138
    %v140 = vrot.slane %v135, %v139
    %v146 = vunpack.c.l.b16 %v131
    %v147 = vunpack.c.l.b16 %v132
    %v148 = vunpack.c.l.b16 %v133
    %v149 = vunpack.c.l.b16 %v134
    %v150 = vpack.c.b16 %v147, %v146
    %v151 = vpack.c.b16 %v149, %v148
    %v155 = vsel %vm85, %v130, 0
    %157 = vmatprep.subr.bf16.mxu0 0
    %158 = vmatpush1.bf16.msra.mxu0 %v150
    %159 = vmatprep.subr.bf16.mxu0 0
    %160 = vmatpush1.bf16.msra.mxu0 %v151
    %161 = vmatprep.subr.bf16.mxu0 0
    %162 = vmatpush1.bf16.msra.mxu0 0
    %163 = vmatprep.subr.bf16.mxu0 0
    %164 = vmatpush1.bf16.msra.mxu0 0
    %165 = vmatprep.subr.bf16.mxu0 0
    %166 = vmatpush1.bf16.msra.mxu0 0
    %167 = vmatprep.subr.bf16.mxu0 0
    %168 = vmatpush1.bf16.msra.mxu0 0
    %169 = vmatprep.subr.bf16.mxu0 0
    %170 = vmatpush1.bf16.msra.mxu0 0
    %171 = vmatprep.subr.bf16.mxu0 0
    %172 = vmatpush1.bf16.msra.mxu0 0
    %173 = vmatprep.subr.bf16.mxu0 0
    %174 = vmatpush1.bf16.msra.mxu0 0
    %175 = vmatprep.subr.bf16.mxu0 0
    %176 = vmatpush1.bf16.msra.mxu0 0
    %177 = vmatprep.subr.bf16.mxu0 0
    %178 = vmatpush1.bf16.msra.mxu0 0
    %179 = vmatprep.subr.bf16.mxu0 0
    %180 = vmatpush1.bf16.msra.mxu0 0
    %181 = vmatprep.subr.bf16.mxu0 0
    %182 = vmatpush1.bf16.msra.mxu0 0
    %183 = vmatprep.subr.bf16.mxu0 0
    %184 = vmatpush1.bf16.msra.mxu0 0
    %185 = vmatprep.subr.bf16.mxu0 0
    %186 = vmatpush1.bf16.msra.mxu0 0
    %187 = vmatprep.subr.bf16.mxu0 0
    %188 = vmatpush1.bf16.msra.mxu0 0
    %189 = vmatprep.mubr.bf16.mxu0 0
    %190 = vmatmul.mubr.bf16.gmra.mrb[0].mxu0 %v155
    %v191 = vpop.f32.mrb[0].mxu0
    %v192 = vadd.f32 %v140, %v191
    %v193 = vpop.f32.mrb[0].mxu0
    %v194 = vpop.f32.mrb[0].mxu0
    %v195 = vpop.f32.mrb[0].mxu0
    %196 = vdwg.mxu0
    %197 = vst [vmem:[#allocation8] sm:$0xff] %v192
    // Predicated region
    $region34: #{tpu_custom_call.1} parent=1 // pred_check
      _
    $region35: #{tpu_custom_call.1} parent=1 // pred_check_branch
      %199 = sbr.rel (0) target = $region37
    $region36: #{tpu_custom_call.1} parent=1 // pred_region
      %s201 = ssub.s32 128, 128
      %202 = vsyncadd [#allocation4], %s201
      %s204 = sshll.u32 [#allocation8], 4
      %s205 = int_to_ptr.vmem [resolvable:$true] %s204
      %207 = dma.vmem_to_hbm [thread:$0]  %s205, 128, %s5, [#allocation4]
    $region37: #{tpu_custom_call.1} parent=1 // pred_fallthru
      _
    // Predicated region
    $region38: #{tpu_custom_call.1} parent=1 // pred_check
      _
    $region39: #{tpu_custom_call.1} parent=1 // pred_check_branch
      %209 = sbr.rel (0) target = $region41
    $region40: #{tpu_custom_call.1} parent=1 // pred_region
      %210 = dma.done [#allocation4], 128
    $region41: #{tpu_custom_call.1} parent=1 // pred_fallthru
      _
    %211 = vsyncpa [#allocation3], 1
    %212 = vsyncpa [#allocation6], 1
    %213 = vsyncpa [#allocation4], 1

</llo_original>
